<compile_context>
chip_gen: v7x
topology: tpu7x:2x2x1
jax: 0.10.0
libtpu: 0.0.40
codegen_flags: <defaults>
</compile_context>

<pallas_src>
import functools

import jax
import jax.numpy as jnp
import numpy as np
from jax.experimental import pallas as pl
from jax.experimental.pallas import tpu as pltpu

BN_EPS = 1e-5


def _round_up(x, m):
    return (x + m - 1) // m * m


def _moments_kernel(x_ref, ss_ref, s_ref):
    """Per-tile input moments: S_partial = x @ x^T  and  s_partial = row sums of x."""
    x = x_ref[...]                                        # (C_in, tm), f32
    # "NT" matmul (contract the lane axis of both operands) -> (C_in, C_in) on the MXU.
    ss = jax.lax.dot_general(
        x, x,
        dimension_numbers=(((1,), (1,)), ((), ())),
        preferred_element_type=jnp.float32)
    ss_ref[...] = ss[None]                                # (1, C_in, C_in)
    s_ref[...] = jnp.sum(x, axis=1, keepdims=True)[None]  # (1, C_in, 1)


def _apply_kernel(w_ref, x_ref, scale_ref, shift_ref, o_ref):
    """Deconv-as-matmul + folded BN affine + ReLU on one lane-dense (CKK, tm) tile."""
    # kernel_size == stride, padding == 0: each output pixel gets exactly one input-pixel
    # contribution, so the transposed conv is a plain (CKK, C_in) @ (C_in, tm) matmul.
    y = jnp.dot(w_ref[...], x_ref[...], preferred_element_type=jnp.float32)
    o_ref[...] = jnp.maximum(y * scale_ref[...] + shift_ref[...], 0.0).astype(o_ref.dtype)


@functools.partial(jax.jit, static_argnames=("tm", "nchw_output", "out_dtype"))
def concat_deconv_bn_relu(xs, weight, bias, gamma, beta, *, tm=None,
                          nchw_output=True, out_dtype=jnp.float32):
    """torch.cat(xs, 1) -> ConvTranspose2d(k, stride=k, pad=0) -> BatchNorm2d(train) -> ReLU.

    xs: list of NCHW arrays. weight: (C_in, C_out, KH, KW) ConvTranspose2d layout.
    `bias` is accepted for API parity but is a mathematical no-op under train-mode
    BatchNorm (cancelled exactly by the batch-mean subtraction), so it is never loaded.
    nchw_output=False returns the kernel-native (C_out*KH*KW, N*H*W) layout for a fused
    consumer (skips the XLA depth-to-space transpose, the largest remaining HBM cost).
    """
    del bias  # cancelled exactly by train-mode BN; dropping it saves a VPU add + DMA stream

    x = jnp.concatenate(xs, axis=1)                       # (N, C_in, H, W)
    N, C_in, H, W = x.shape
    C_in_w, C_out, KH, KW = weight.shape
    assert C_in == C_in_w
    KK = KH * KW
    CKK = C_out * KK
    M = N * H * W

    # Channels-on-sublanes / pixels-on-lanes layout (one small XLA copy fusion over the
    # tiny-channel input; ~1/8 the size of the output stream).
    x_t = jnp.transpose(x, (1, 0, 2, 3)).reshape(C_in, M).astype(jnp.float32)
    w_t = jnp.transpose(weight.reshape(C_in, CKK)).astype(jnp.float32)     # (CKK, C_in)

    if tm is None:
        # Big lane-dense tiles amortize the ~0.35 us/step grid overhead; footprint at
        # tm=16384 is ~5 MiB (out 2 MiB + x 0.25 MiB, x2 double buffering) — well inside
        # the default scoped VMEM limit on v5e/v6e/v7x.
        tm = min(16384, _round_up(M, 128))
    tm = max(128, _round_up(tm, 128))
    M_pad = _round_up(M, tm)
    if M_pad != M:
        x_t = jnp.pad(x_t, ((0, 0), (0, M_pad - M)))      # zero pixels: no effect on stats
    num_tiles = M_pad // tm

    # ---------------- Pass 1: per-tile input moments (tile axis fully parallel) -------------
    ss_parts, s_parts = pl.pallas_call(
        _moments_kernel,
        out_shape=(jax.ShapeDtypeStruct((num_tiles, C_in, C_in), jnp.float32),
                   jax.ShapeDtypeStruct((num_tiles, C_in, 1), jnp.float32)),
        grid=(num_tiles,),
        # If profiling shows exposed DMA in this (compute-light) pass, add
        # pipeline_mode=pl.Buffered(3) to the x BlockSpec below (review item 8).
        in_specs=[pl.BlockSpec((C_in, tm), lambda t: (0, t))],
        out_specs=(pl.BlockSpec((1, C_in, C_in), lambda t: (t, 0, 0)),
                   pl.BlockSpec((1, C_in, 1), lambda t: (t, 0, 0))),
        compiler_params=pltpu.CompilerParams(dimension_semantics=("parallel",)),
    )(x_t)

    # ---------------- XLA fold (CKK-sized scalars): BN batch stats -> scale/shift -----------
    # y_r[m] = w_t[r,:] . x[:,m]  (no bias), so
    #   sum_m y_r      = w_t[r,:] . s
    #   sum_m y_r^2    = w_t[r,:] S w_t[r,:]^T
    # and the BN statistics of channel c are the average over its KK rows (M*KK pixels).
    S = jnp.sum(ss_parts, axis=0)                          # (C_in, C_in)
    s = jnp.sum(s_parts, axis=0)[:, 0]                     # (C_in,)
    count = float(M * KK)                                  # real pixel count (padding is zero)
    row_sum = w_t @ s                                      # (CKK,)
    row_sumsq = jnp.sum((w_t @ S) * w_t, axis=1)           # (CKK,)
    ch_mean = row_sum.reshape(C_out, KK).sum(axis=1) / count
    ch_ey2 = row_sumsq.reshape(C_out, KK).sum(axis=1) / count
    var = jnp.maximum(ch_ey2 - ch_mean * ch_mean, 0.0)     # clamp: avoid NaN via rsqrt
    scale_c = gamma.astype(jnp.float32) * jax.lax.rsqrt(var + BN_EPS)
    shift_c = beta.astype(jnp.float32) - ch_mean * scale_c
    scale = jnp.repeat(scale_c, KK).reshape(CKK, 1)        # per-row (CKK, 1)
    shift = jnp.repeat(shift_c, KK).reshape(CKK, 1)

    # ---------------- Pass 2: deconv matmul + BN affine + ReLU (tile axis parallel) ---------
    y_t = pl.pallas_call(
        _apply_kernel,
        out_shape=jax.ShapeDtypeStruct((CKK, M_pad), out_dtype),
        grid=(num_tiles,),
        in_specs=[pl.BlockSpec((CKK, C_in), lambda t: (0, 0)),   # weights, VMEM-resident
                  pl.BlockSpec((C_in, tm), lambda t: (0, t)),    # x tile
                  pl.BlockSpec((CKK, 1), lambda t: (0, 0)),      # folded BN scale
                  pl.BlockSpec((CKK, 1), lambda t: (0, 0))],     # folded BN shift
        out_specs=pl.BlockSpec((CKK, tm), lambda t: (0, t)),
        compiler_params=pltpu.CompilerParams(dimension_semantics=("parallel",)),
    )(w_t, x_t, scale, shift)

    y_t = y_t[:, :M]                                       # drop padded pixels
    if not nchw_output:
        # Kernel-native layout: rows = (c_out, kh, kw), cols = (n, h, w). A fused U-Net
        # consumer reading this directly skips the depth-to-space transpose below.
        return y_t

    # Depth-to-space shuffle to NCHW (single XLA transpose on the critical path; removed
    # entirely when the consumer accepts the native layout above).
    Ho, Wo = H * KH, W * KW
    y = y_t.reshape(C_out, KH, KW, N, H, W)
    y = jnp.transpose(y, (3, 0, 4, 1, 5, 2)).reshape(N, C_out, Ho, Wo)
    return y


def _reference_numpy(xs, weight, bias, gamma, beta):
    """Direct ConvTranspose2d + train-mode BN + ReLU reference (NCHW, f64 accumulation)."""
    x = np.concatenate([np.asarray(a) for a in xs], axis=1)
    w = np.asarray(weight)
    b = np.asarray(bias)
    N, C_in, H, W = x.shape
    _, C_out, KH, KW = w.shape
    Ho, Wo = H * KH, W * KW  # stride == kernel, pad = 0
    out = np.zeros((N, C_out, Ho, Wo), dtype=np.float64)
    for i in range(H):
        for j in range(W):
            for ki in range(KH):
                for kj in range(KW):
                    out[:, :, i * KH + ki, j * KW + kj] += x[:, :, i, j] @ w[:, :, ki, kj]
    out += b[None, :, None, None]
    mean = out.mean(axis=(0, 2, 3), keepdims=True)
    var = out.var(axis=(0, 2, 3), keepdims=True)  # biased
    out = (out - mean) / np.sqrt(var + BN_EPS)
    out = out * np.asarray(gamma)[None, :, None, None] + np.asarray(beta)[None, :, None, None]
    return np.maximum(out, 0.0)


if __name__ == "__main__":
    key = jax.random.PRNGKey(0)
    k1, k2, k3, k4, k5 = jax.random.split(key, 5)

    # Concat of two 2-channel feature maps -> ConvTranspose2d(4, 8, kernel_size=2, stride=2).
    N, H, W = 2, 16, 16
    C_half, C_out, K = 2, 8, 2
    C_in = 2 * C_half

    x0 = jax.random.normal(k1, (N, C_half, H, W), dtype=jnp.float32)
    x1 = jax.random.normal(k2, (N, C_half, H, W), dtype=jnp.float32)

    # ConvTranspose2d weight layout: (in_channels, out_channels, kH, kW)
    weight = 0.1 * jax.random.normal(k3, (C_in, C_out, K, K), dtype=jnp.float32)
    bias = 0.1 * jax.random.normal(k4, (C_out,), dtype=jnp.float32)
    gamma = 1.0 + 0.1 * jax.random.normal(k5, (C_out,), dtype=jnp.float32)
    beta = 0.05 * jnp.ones((C_out,), dtype=jnp.float32)

    # tm=128 exercises the multi-tile parallel grids (M = 512 -> 4 lane-dense tiles).
    out = concat_deconv_bn_relu([x0, x1], weight, bias, gamma, beta, tm=128)
    out = jax.block_until_ready(out)
    ref = _reference_numpy([x0, x1], weight, bias, gamma, beta)
    assert out.shape == (N, C_out, H * K, W * K), out.shape
    np.testing.assert_allclose(np.asarray(out), ref, rtol=1e-3, atol=1e-3)

    # Ragged spatial size exercises the zero-padded last tile with the default tile width.
    W2 = 15
    x2 = jax.random.normal(k1, (N, C_half, H, W2), dtype=jnp.float32)
    x3 = jax.random.normal(k2, (N, C_half, H, W2), dtype=jnp.float32)
    out2 = jax.block_until_ready(concat_deconv_bn_relu([x2, x3], weight, bias, gamma, beta))
    ref2 = _reference_numpy([x2, x3], weight, bias, gamma, beta)
    assert out2.shape == (N, C_out, H * K, W2 * K), out2.shape
    np.testing.assert_allclose(np.asarray(out2), ref2, rtol=1e-3, atol=1e-3)

    # Kernel-native layout path (what a fused U-Net consumer would read directly).
    out3 = jax.block_until_ready(
        concat_deconv_bn_relu([x0, x1], weight, bias, gamma, beta, nchw_output=False))
    assert out3.shape == (C_out * K * K, N * H * W), out3.shape

    print("KERNEL_OK")
</pallas_src>

<mosaic_0001>
module attributes {stable_mosaic.version = 11 : i64} {
  func.func @_moments_kernel(%arg0: i32, %arg1: memref<4x128xf32, #tpu.memory_space<vmem>>, %arg2: memref<1x4x4xf32, #tpu.memory_space<vmem>>, %arg3: memref<1x4x1xf32, #tpu.memory_space<vmem>>) attributes {dimension_semantics = [#tpu.dimension_semantics<parallel>], iteration_bounds = array<i64: 4>, scalar_prefetch = 0 : i64, scratch_operands = 0 : i64, tpu.core_type = #tpu.core_type<tc>, window_params = [{transform_indices = @transform_0, window_bounds = array<i64: 4, 128>}, {transform_indices = @transform_1, window_bounds = array<i64: 1, 4, 4>}, {transform_indices = @transform_2, window_bounds = array<i64: 1, 4, 1>}]} {
    %c0 = arith.constant 0 : index
    %c0_0 = arith.constant 0 : index
    %0 = vector.load %arg1[%c0, %c0_0] : memref<4x128xf32, #tpu.memory_space<vmem>>, vector<4x128xf32>
    %cst = arith.constant dense<0.000000e+00> : vector<4x4xf32>
    %1 = tpu.matmul %0, %0, %cst {dimension_numbers = #tpu.dot_dimension_numbers<[1], [1], [0], [0], [0, 0, 1, 0], [], []>} : vector<4x128xf32>, vector<4x128xf32>, vector<4x4xf32> -> vector<4x4xf32>
    %2 = vector.shape_cast %1 : vector<4x4xf32> to vector<1x4x4xf32>
    %c0_1 = arith.constant 0 : index
    %c0_2 = arith.constant 0 : index
    %c0_3 = arith.constant 0 : index
    %3 = vector.load %arg2[%c0_1, %c0_2, %c0_3] : memref<1x4x4xf32, #tpu.memory_space<vmem>>, vector<1x4x4xf32>
    tpu.vector_store %arg2[%c0_1, %c0_2, %c0_3], %2 {strides = array<i32>} : memref<1x4x4xf32, #tpu.memory_space<vmem>>, vector<1x4x4xf32>,
    %cst_4 = arith.constant dense<0.000000e+00> : vector<4xf32>
    %4 = vector.multi_reduction <add>, %0, %cst_4 [1] : vector<4x128xf32> to vector<4xf32>
    %5 = vector.shape_cast %4 : vector<4xf32> to vector<4x1xf32>
    %6 = vector.shape_cast %5 : vector<4x1xf32> to vector<1x4x1xf32>
    %c0_5 = arith.constant 0 : index
    %c0_6 = arith.constant 0 : index
    %c0_7 = arith.constant 0 : index
    %7 = vector.load %arg3[%c0_5, %c0_6, %c0_7] : memref<1x4x1xf32, #tpu.memory_space<vmem>>, vector<1x4x1xf32>
    tpu.vector_store %arg3[%c0_5, %c0_6, %c0_7], %6 {strides = array<i32>} : memref<1x4x1xf32, #tpu.memory_space<vmem>>, vector<1x4x1xf32>,
    return
  }
  func.func @transform_0(%arg0: i32) -> (i32, i32) {
    %c0_i32 = arith.constant 0 : i32
    %c0_i32_0 = arith.constant 0 : i32
    return %c0_i32, %arg0 : i32, i32
  }
  func.func @transform_1(%arg0: i32) -> (i32, i32, i32) {
    %c0_i32 = arith.constant 0 : i32
    %c0_i32_0 = arith.constant 0 : i32
    %c0_i32_1 = arith.constant 0 : i32
    return %arg0, %c0_i32, %c0_i32_0 : i32, i32, i32
  }
  func.func @transform_2(%arg0: i32) -> (i32, i32, i32) {
    %c0_i32 = arith.constant 0 : i32
    %c0_i32_0 = arith.constant 0 : i32
    %c0_i32_1 = arith.constant 0 : i32
    return %arg0, %c0_i32, %c0_i32_0 : i32, i32, i32
  }
}

module attributes {stable_mosaic.version = 11 : i64} {
  func.func @_apply_kernel(%arg0: i32, %arg1: memref<32x4xf32, #tpu.memory_space<vmem>>, %arg2: memref<4x128xf32, #tpu.memory_space<vmem>>, %arg3: memref<32x1xf32, #tpu.memory_space<vmem>>, %arg4: memref<32x1xf32, #tpu.memory_space<vmem>>, %arg5: memref<32x128xf32, #tpu.memory_space<vmem>>) attributes {dimension_semantics = [#tpu.dimension_semantics<parallel>], iteration_bounds = array<i64: 4>, scalar_prefetch = 0 : i64, scratch_operands = 0 : i64, tpu.core_type = #tpu.core_type<tc>, window_params = [{pipeline_mode = #tpu.pipeline_mode<synchronous>, transform_indices = @transform_0, window_bounds = array<i64: 32, 4>}, {transform_indices = @transform_1, window_bounds = array<i64: 4, 128>}, {pipeline_mode = #tpu.pipeline_mode<synchronous>, transform_indices = @transform_2, window_bounds = array<i64: 32, 1>}, {pipeline_mode = #tpu.pipeline_mode<synchronous>, transform_indices = @transform_3, window_bounds = array<i64: 32, 1>}, {transform_indices = @transform_4, window_bounds = array<i64: 32, 128>}]} {
    %c0 = arith.constant 0 : index
    %c0_0 = arith.constant 0 : index
    %0 = vector.load %arg1[%c0, %c0_0] : memref<32x4xf32, #tpu.memory_space<vmem>>, vector<32x4xf32>
    %c0_1 = arith.constant 0 : index
    %c0_2 = arith.constant 0 : index
    %1 = vector.load %arg2[%c0_1, %c0_2] : memref<4x128xf32, #tpu.memory_space<vmem>>, vector<4x128xf32>
    %cst = arith.constant dense<0.000000e+00> : vector<32x128xf32>
    %2 = tpu.matmul %0, %1, %cst {dimension_numbers = #tpu.dot_dimension_numbers<[1], [0], [0], [1], [0, 0, 1, 1], [], []>} : vector<32x4xf32>, vector<4x128xf32>, vector<32x128xf32> -> vector<32x128xf32>
    %c0_3 = arith.constant 0 : index
    %c0_4 = arith.constant 0 : index
    %3 = vector.load %arg3[%c0_3, %c0_4] : memref<32x1xf32, #tpu.memory_space<vmem>>, vector<32x1xf32>
    %4 = vector.broadcast %3 : vector<32x1xf32> to vector<32x128xf32>
    %5 = arith.mulf %2, %4 : vector<32x128xf32>
    %c0_5 = arith.constant 0 : index
    %c0_6 = arith.constant 0 : index
    %6 = vector.load %arg4[%c0_5, %c0_6] : memref<32x1xf32, #tpu.memory_space<vmem>>, vector<32x1xf32>
    %7 = vector.broadcast %6 : vector<32x1xf32> to vector<32x128xf32>
    %8 = arith.addf %5, %7 : vector<32x128xf32>
    %cst_7 = arith.constant 0.000000e+00 : f32
    %9 = vector.broadcast %cst_7 : f32 to vector<32x128xf32>
    %10 = arith.maximumf %8, %9 : vector<32x128xf32>
    %c0_8 = arith.constant 0 : index
    %c0_9 = arith.constant 0 : index
    %11 = vector.load %arg5[%c0_8, %c0_9] : memref<32x128xf32, #tpu.memory_space<vmem>>, vector<32x128xf32>
    tpu.vector_store %arg5[%c0_8, %c0_9], %10 {strides = array<i32>} : memref<32x128xf32, #tpu.memory_space<vmem>>, vector<32x128xf32>,
    return
  }
  func.func @transform_0(%arg0: i32) -> (i32, i32) {
    %c0_i32 = arith.constant 0 : i32
    %c0_i32_0 = arith.constant 0 : i32
    %c0_i32_1 = arith.constant 0 : i32
    return %c0_i32, %c0_i32_0 : i32, i32
  }
  func.func @transform_1(%arg0: i32) -> (i32, i32) {
    %c0_i32 = arith.constant 0 : i32
    %c0_i32_0 = arith.constant 0 : i32
    return %c0_i32, %arg0 : i32, i32
  }
  func.func @transform_2(%arg0: i32) -> (i32, i32) {
    %c0_i32 = arith.constant 0 : i32
    %c0_i32_0 = arith.constant 0 : i32
    %c0_i32_1 = arith.constant 0 : i32
    return %c0_i32, %c0_i32_0 : i32, i32
  }
  func.func @transform_3(%arg0: i32) -> (i32, i32) {
    %c0_i32 = arith.constant 0 : i32
    %c0_i32_0 = arith.constant 0 : i32
    %c0_i32_1 = arith.constant 0 : i32
    return %c0_i32, %c0_i32_0 : i32, i32
  }
  func.func @transform_4(%arg0: i32) -> (i32, i32) {
    %c0_i32 = arith.constant 0 : i32
    %c0_i32_0 = arith.constant 0 : i32
    return %c0_i32, %arg0 : i32, i32
  }
}

</mosaic_0001>

<llo_original>
// kernel: concat_deconv_bn_relu.3
$region0: #{concat_deconv_bn_relu.3}
  #allocation0 [shape = 'u32[]', space=smem, size = 0x4, offset = 0x4, fixed_abs, tag = 'smem constant byte address 0x4 - core index']
  #allocation1 [shape = 'u32[144,128]{1,0:T(1,128)}', space=vmem, size = 0x12000, scoped, tag = 'internal scratch']
  %s0 = inlined_call_operand.vmem [shape: f32[32,4], index: 0, kind: input, shape index: {}]
  %s1 = inlined_call_operand.vmem [shape: f32[4,512], index: 1, kind: input, shape index: {}]
  %s2 = inlined_call_operand.vmem [shape: f32[32,1], index: 2, kind: input, shape index: {}]
  %s3 = inlined_call_operand.vmem [shape: f32[32,1], index: 3, kind: input, shape index: {}]
  %s4 = inlined_call_operand.vmem [shape: f32[32,512], index: 4, kind: output, shape index: {}]
  %s5 = sld [smem:[#allocation0]]
  $region83: #{concat_deconv_bn_relu.3} parent=0
    _
  %s7 = ssub.s32 1, %s5
  %s8 = scalar_select 0, %s7, %s5
  $region1: #{concat_deconv_bn_relu.3} parent=0
    #allocation2 [shape = 'u8[32768]{0}', space=vmem, size = 0x8000, scoped, tag = 'output window, operand 0']
    loop: start=0, step=1, limit=6
    $region2: #{concat_deconv_bn_relu.3} parent=1 // loop_pre_header
      _
    $region3: #{concat_deconv_bn_relu.3} parent=1 // loop_header
      %s10 = sphi 0, %s14
      %p11 = scmp.ge.s32.totalorder %s10, 6
      %s18 = sphi 0, %s18
      %s20 = sphi 0, %s18
      %s21 = sphi 0, %s20
      %s35 = sphi 0, %s21
      %s41 = sphi 0, %s43
      %s44 = sphi 0, %s41
      %s45 = sphi 0, %s44
      %s61 = sphi 0, %s45
      %s65 = sphi 0, %s65
      %s67 = sphi 0, %s65
      %s68 = sphi 0, %s67
      %s82 = sphi 0, %s68
      %s86 = sphi 0, %s86
      %s88 = sphi 0, %s86
      %s89 = sphi 0, %s88
      %s103 = sphi 0, %s89
      %s109 = sphi 0, %s111
      %s112 = sphi 0, %s109
      %s113 = sphi 0, %s112
      %s129 = sphi 0, %s113
    $region4: #{concat_deconv_bn_relu.3} parent=1 // loop_header_branch
      %13 = sbr.rel (%p11) target = $region8
    $region5: #{concat_deconv_bn_relu.3} parent=1 // loop_body
      %s15 = ssub.s32 %s10, 1
      %s16 = ssub.s32 %s10, 2
      %s17 = sadd.s32 %s10, 1
      %s19 = sadd.s32 %s18, 1
      %p22 = scmp.eq.s32.totalorder %s10, 3
      %p23 = scmp.ne.s32.totalorder %s18, %s20
      %p24 = scmp.eq.s32.totalorder %s10, 0
      %p25 = por %p23, %p24
      %p26 = scmp.ne.s32.totalorder %s18, %s20
      %p27 = scmp.eq.s32.totalorder %s15, 3
      %p28 = por %p26, %p27
      %p29 = scmp.ne.s32.totalorder %s20, %s21
      %p30 = scmp.eq.s32.totalorder %s15, 0
      %p31 = por %p29, %p30
      %p32 = scmp.ne.s32.totalorder %s20, %s21
      %p33 = scmp.eq.s32.totalorder %s16, 3
      %p34 = por %p32, %p33
      %p36 = scmp.ne.s32.totalorder %s21, %s35
      %p37 = scmp.eq.s32.totalorder %s16, 0
      %p38 = por %p36, %p37
      %s39 = ssub.s32 %s10, %s17
      %p40 = scmp.eq.s32.totalorder %s39, 0
      %s42 = sadd.s32 %s41, 1
      %s43 = scalar_select %p40, %s41, %s42
      %p46 = pneg %p40
      %p47 = scmp.eq.s32.totalorder %s10, 3
      %p48 = por %p46, %p47
      %p49 = scmp.ne.s32.totalorder %s41, %s44
      %p50 = scmp.eq.s32.totalorder %s10, 0
      %p51 = por %p49, %p50
      %p52 = scmp.ne.s32.totalorder %s41, %s44
      %p53 = scmp.eq.s32.totalorder %s15, 3
      %p54 = por %p52, %p53
      %p55 = scmp.ne.s32.totalorder %s44, %s45
      %p56 = scmp.eq.s32.totalorder %s15, 0
      %p57 = por %p55, %p56
      %p58 = scmp.ne.s32.totalorder %s44, %s45
      %p59 = scmp.eq.s32.totalorder %s16, 3
      %p60 = por %p58, %p59
      %p62 = scmp.ne.s32.totalorder %s45, %s61
      %p63 = scmp.eq.s32.totalorder %s16, 0
      %p64 = por %p62, %p63
      %s66 = sadd.s32 %s65, 1
      %p69 = scmp.eq.s32.totalorder %s10, 3
      %p70 = scmp.ne.s32.totalorder %s65, %s67
      %p71 = scmp.eq.s32.totalorder %s10, 0
      %p72 = por %p70, %p71
      %p73 = scmp.ne.s32.totalorder %s65, %s67
      %p74 = scmp.eq.s32.totalorder %s15, 3
      %p75 = por %p73, %p74
      %p76 = scmp.ne.s32.totalorder %s67, %s68
      %p77 = scmp.eq.s32.totalorder %s15, 0
      %p78 = por %p76, %p77
      %p79 = scmp.ne.s32.totalorder %s67, %s68
      %p80 = scmp.eq.s32.totalorder %s16, 3
      %p81 = por %p79, %p80
      %p83 = scmp.ne.s32.totalorder %s68, %s82
      %p84 = scmp.eq.s32.totalorder %s16, 0
      %p85 = por %p83, %p84
      %s87 = sadd.s32 %s86, 1
      %p90 = scmp.eq.s32.totalorder %s10, 3
      %p91 = scmp.ne.s32.totalorder %s86, %s88
      %p92 = scmp.eq.s32.totalorder %s10, 0
      %p93 = por %p91, %p92
      %p94 = scmp.ne.s32.totalorder %s86, %s88
      %p95 = scmp.eq.s32.totalorder %s15, 3
      %p96 = por %p94, %p95
      %p97 = scmp.ne.s32.totalorder %s88, %s89
      %p98 = scmp.eq.s32.totalorder %s15, 0
      %p99 = por %p97, %p98
      %p100 = scmp.ne.s32.totalorder %s88, %s89
      %p101 = scmp.eq.s32.totalorder %s16, 3
      %p102 = por %p100, %p101
      %p104 = scmp.ne.s32.totalorder %s89, %s103
      %p105 = scmp.eq.s32.totalorder %s16, 0
      %p106 = por %p104, %p105
      %s107 = ssub.s32 %s10, %s17
      %p108 = scmp.eq.s32.totalorder %s107, 0
      %s110 = sadd.s32 %s109, 1
      %s111 = scalar_select %p108, %s109, %s110
      %p114 = pneg %p108
      %p115 = scmp.eq.s32.totalorder %s10, 3
      %p116 = por %p114, %p115
      %p117 = scmp.ne.s32.totalorder %s109, %s112
      %p118 = scmp.eq.s32.totalorder %s10, 0
      %p119 = por %p117, %p118
      %p120 = scmp.ne.s32.totalorder %s109, %s112
      %p121 = scmp.eq.s32.totalorder %s15, 3
      %p122 = por %p120, %p121
      %p123 = scmp.ne.s32.totalorder %s112, %s113
      %p124 = scmp.eq.s32.totalorder %s15, 0
      %p125 = por %p123, %p124
      %p126 = scmp.ne.s32.totalorder %s112, %s113
      %p127 = scmp.eq.s32.totalorder %s16, 3
      %p128 = por %p126, %p127
      %p130 = scmp.ne.s32.totalorder %s113, %s129
      %p131 = scmp.eq.s32.totalorder %s16, 0
      %p132 = por %p130, %p131
      %p133 = scmp.le.s32.totalorder 1, %s10
      %p134 = scmp.lt.s32.totalorder %s10, 5
      %p135 = pnand %p133, %p134
      %p136 = pneg %p135
      // Predicated region
      $region9: #{concat_deconv_bn_relu.3} parent=5 // pred_check
        _
      $region10: #{concat_deconv_bn_relu.3} parent=5 // pred_check_branch
        %138 = sbr.rel (%p135) target = $region12
      $region11: #{concat_deconv_bn_relu.3} parent=5 // pred_region
        %s139 = ssub.s32 %s10, 1
        // Predicated region
        $region13: #{concat_deconv_bn_relu.3} parent=11 // pred_check
          %p140 = pneg %p31
        $region14: #{concat_deconv_bn_relu.3} parent=11 // pred_check_branch
          %142 = sbr.rel (%p140) target = $region16
        $region15: #{concat_deconv_bn_relu.3} parent=11 // pred_region
          _
        $region16: #{concat_deconv_bn_relu.3} parent=11 // pred_fallthru
          _
        // Predicated region
        $region17: #{concat_deconv_bn_relu.3} parent=11 // pred_check
          %p143 = pneg %p78
        $region18: #{concat_deconv_bn_relu.3} parent=11 // pred_check_branch
          %145 = sbr.rel (%p143) target = $region20
        $region19: #{concat_deconv_bn_relu.3} parent=11 // pred_region
          _
        $region20: #{concat_deconv_bn_relu.3} parent=11 // pred_fallthru
          _
        // Predicated region
        $region21: #{concat_deconv_bn_relu.3} parent=11 // pred_check
          %p146 = pneg %p99
        $region22: #{concat_deconv_bn_relu.3} parent=11 // pred_check_branch
          %148 = sbr.rel (%p146) target = $region24
        $region23: #{concat_deconv_bn_relu.3} parent=11 // pred_region
          _
        $region24: #{concat_deconv_bn_relu.3} parent=11 // pred_fallthru
          _
      $region12: #{concat_deconv_bn_relu.3} parent=5 // pred_fallthru
        _
      %p149 = scmp.lt.s32.totalorder %s10, 4
      // Predicated region
      $region25: #{concat_deconv_bn_relu.3} parent=5 // pred_check
        %p150 = pneg %p149
      $region26: #{concat_deconv_bn_relu.3} parent=5 // pred_check_branch
        %152 = sbr.rel (%p150) target = $region28
      $region27: #{concat_deconv_bn_relu.3} parent=5 // pred_region
        // Predicated region
        $region29: #{concat_deconv_bn_relu.3} parent=27 // pred_check
          %p153 = pneg %p51
        $region30: #{concat_deconv_bn_relu.3} parent=27 // pred_check_branch
          %155 = sbr.rel (%p153) target = $region32
        $region31: #{concat_deconv_bn_relu.3} parent=27 // pred_region
          %p156 = scmp.lt.s32.totalorder %s10, 3
          %s157 = scalar_select %p156, %s10, 3
          %s158 = smul.addr %s157, 4
          %s159 = scalar_lea.vmem %s1, %s158
        $region32: #{concat_deconv_bn_relu.3} parent=27 // pred_fallthru
          _
      $region28: #{concat_deconv_bn_relu.3} parent=5 // pred_fallthru
        _
      %p160 = scmp.le.s32.totalorder 1, %s10
      %p161 = scmp.lt.s32.totalorder %s10, 5
      %p162 = pnand %p160, %p161
      %p163 = pneg %p162
      // Predicated region
      $region33: #{concat_deconv_bn_relu.3} parent=5 // pred_check
        _
      $region34: #{concat_deconv_bn_relu.3} parent=5 // pred_check_branch
        %165 = sbr.rel (%p162) target = $region36
      $region35: #{concat_deconv_bn_relu.3} parent=5 // pred_region
        %s166 = ssub.s32 %s10, 1
        %p167 = pneg %p31
        %p168 = pneg %p28
        %p169 = scmp.lt.s32.totalorder %s15, 3
        %s170 = scalar_select %p169, %s15, 3
        %s171 = smul.addr %s170, 4
        %s172 = scalar_lea.vmem %s1, %s171
        %p173 = pneg %p57
        %p174 = pneg %p54
        %p175 = pneg %p78
        %p176 = pneg %p75
        %p177 = pneg %p99
        %p178 = pneg %p96
        %p179 = pneg %p125
        %p180 = pneg %p122
        %s181 = sand.u32 %s112, 1
        %s182 = sand.u32 %s112, 1
        %s183 = smul.addr %s182, 32
        %s184 = scalar_lea.vmem [#allocation2], %s183
        %p185 = scmp.lt.s32.totalorder %s15, 3
        %s186 = scalar_select %p185, %s15, 3
        %s187 = smul.addr %s186, 4
        %s188 = scalar_lea.vmem %s1, %s187
        %v189 = vld [vmem:[%s0] sm:$0xff]
        %v190 = vld [vmem:[%s0 + $0x8] sm:$0xff]
        %v191 = vld [vmem:[%s0 + $0x10] sm:$0xff]
        %v192 = vld [vmem:[%s0 + $0x18] sm:$0xff]
        %v193 = vld [vmem:[%s188] sm:$0xf]
        %vm194 = vcmask 31744
        %v196 = vsel %vm194, %v189, 0
        %v199 = vsel %vm194, %v190, 0
        %v202 = vsel %vm194, %v191, 0
        %v205 = vsel %vm194, %v192, 0
        %vm207 = vcmask 1043456
        %v209 = vsel %vm207, %v193, 0
        %211 = vmatprep.subr.mxu0 0.0
        %212 = vmatpush1.msra.mxu0 %v209
        %213 = vmatprep.subr.mxu0 0.0
        %214 = vmatpush1.msra.mxu0 0.0
        %215 = vmatprep.subr.mxu0 0.0
        %216 = vmatpush1.msra.mxu0 0.0
        %217 = vmatprep.subr.mxu0 0.0
        %218 = vmatpush1.msra.mxu0 0.0
        %219 = vmatprep.subr.mxu0 0.0
        %220 = vmatpush1.msra.mxu0 0.0
        %221 = vmatprep.subr.mxu0 0.0
        %222 = vmatpush1.msra.mxu0 0.0
        %223 = vmatprep.subr.mxu0 0.0
        %224 = vmatpush1.msra.mxu0 0.0
        %225 = vmatprep.subr.mxu0 0.0
        %226 = vmatpush1.msra.mxu0 0.0
        %227 = vmatprep.subr.mxu0 0.0
        %228 = vmatpush1.msra.mxu0 0.0
        %229 = vmatprep.subr.mxu0 0.0
        %230 = vmatpush1.msra.mxu0 0.0
        %231 = vmatprep.subr.mxu0 0.0
        %232 = vmatpush1.msra.mxu0 0.0
        %233 = vmatprep.subr.mxu0 0.0
        %234 = vmatpush1.msra.mxu0 0.0
        %235 = vmatprep.subr.mxu0 0.0
        %236 = vmatpush1.msra.mxu0 0.0
        %237 = vmatprep.subr.mxu0 0.0
        %238 = vmatpush1.msra.mxu0 0.0
        %239 = vmatprep.subr.mxu0 0.0
        %240 = vmatpush1.msra.mxu0 0.0
        %241 = vmatprep.subr.mxu0 0.0
        %242 = vmatpush1.msra.mxu0 0.0
        %243 = vmatprep.subr.mxu0 0.0
        %244 = vmatpush1.msra.mxu0 0.0
        %245 = vmatprep.subr.mxu0 0.0
        %246 = vmatpush1.msra.mxu0 0.0
        %247 = vmatprep.subr.mxu0 0.0
        %248 = vmatpush1.msra.mxu0 0.0
        %249 = vmatprep.subr.mxu0 0.0
        %250 = vmatpush1.msra.mxu0 0.0
        %251 = vmatprep.subr.mxu0 0.0
        %252 = vmatpush1.msra.mxu0 0.0
        %253 = vmatprep.subr.mxu0 0.0
        %254 = vmatpush1.msra.mxu0 0.0
        %255 = vmatprep.subr.mxu0 0.0
        %256 = vmatpush1.msra.mxu0 0.0
        %257 = vmatprep.subr.mxu0 0.0
        %258 = vmatpush1.msra.mxu0 0.0
        %259 = vmatprep.subr.mxu0 0.0
        %260 = vmatpush1.msra.mxu0 0.0
        %261 = vmatprep.subr.mxu0 0.0
        %262 = vmatpush1.msra.mxu0 0.0
        %263 = vmatprep.subr.mxu0 0.0
        %264 = vmatpush1.msra.mxu0 0.0
        %265 = vmatprep.subr.mxu0 0.0
        %266 = vmatpush1.msra.mxu0 0.0
        %267 = vmatprep.subr.mxu0 0.0
        %268 = vmatpush1.msra.mxu0 0.0
        %269 = vmatprep.subr.mxu0 0.0
        %270 = vmatpush1.msra.mxu0 0.0
        %271 = vmatprep.subr.mxu0 0.0
        %272 = vmatpush1.msra.mxu0 0.0
        %273 = vmatprep.subr.mxu0 0.0
        %274 = vmatpush1.msra.mxu0 0.0
        %275 = vmatprep.mubr.f32.mxu0 0.0
        %276 = vmatmul.mubr.f32.gmra.mrb[0].mxu0 %v196
        %v277 = vpop.f32.mrb[0].mxu0
        %v278 = vadd.f32 0.0, %v277
        %v279 = vpop.f32.mrb[0].mxu0
        %280 = vmatprep.mubr.f32.mxu0 0.0
        %281 = vmatmul.mubr.f32.gmra.mrb[0].mxu0 %v199
        %v282 = vpop.f32.mrb[0].mxu0
        %v283 = vadd.f32 0.0, %v282
        %v284 = vpop.f32.mrb[0].mxu0
        %285 = vmatprep.mubr.f32.mxu0 0.0
        %286 = vmatmul.mubr.f32.gmra.mrb[0].mxu0 %v202
        %v287 = vpop.f32.mrb[0].mxu0
        %v288 = vadd.f32 0.0, %v287
        %v289 = vpop.f32.mrb[0].mxu0
        %290 = vmatprep.mubr.f32.mxu0 0.0
        %291 = vmatmul.mubr.f32.gmra.mrb[0].mxu0 %v205
        %v292 = vpop.f32.mrb[0].mxu0
        %v293 = vadd.f32 0.0, %v292
        %v294 = vpop.f32.mrb[0].mxu0
        %295 = vdwg.mxu0
        %v296 = vld [vmem:[%s2] sm:$0xff]
        %v297 = vld [vmem:[%s2 + $0x8] sm:$0xff]
        %v298 = vld [vmem:[%s2 + $0x10] sm:$0xff]
        %v299 = vld [vmem:[%s2 + $0x18] sm:$0xff]
        %301 = vset.pattern.permute.xlu0 0
        %302 = vperm.xlu0 %301, %v296
        %v303 = vpop.permute.xlu0 %302
        %306 = vset.pattern.permute.xlu0 0
        %307 = vperm.xlu0 %306, %v297
        %v308 = vpop.permute.xlu0 %307
        %311 = vset.pattern.permute.xlu0 0
        %312 = vperm.xlu0 %311, %v298
        %v313 = vpop.permute.xlu0 %312
        %316 = vset.pattern.permute.xlu0 0
        %317 = vperm.xlu0 %316, %v299
        %v318 = vpop.permute.xlu0 %317
        %v320 = vmul.f32 %v278, %v303
        %v321 = vmul.f32 %v283, %v308
        %v322 = vmul.f32 %v288, %v313
        %v323 = vmul.f32 %v293, %v318
        %v324 = vld [vmem:[%s3] sm:$0xff]
        %v325 = vld [vmem:[%s3 + $0x8] sm:$0xff]
        %v326 = vld [vmem:[%s3 + $0x10] sm:$0xff]
        %v327 = vld [vmem:[%s3 + $0x18] sm:$0xff]
        %329 = vset.pattern.permute.xlu0 0
        %330 = vperm.xlu0 %329, %v324
        %v331 = vpop.permute.xlu0 %330
        %334 = vset.pattern.permute.xlu0 0
        %335 = vperm.xlu0 %334, %v325
        %v336 = vpop.permute.xlu0 %335
        %339 = vset.pattern.permute.xlu0 0
        %340 = vperm.xlu0 %339, %v326
        %v341 = vpop.permute.xlu0 %340
        %344 = vset.pattern.permute.xlu0 0
        %345 = vperm.xlu0 %344, %v327
        %v346 = vpop.permute.xlu0 %345
        %v348 = vadd.f32 %v320, %v331
        %v349 = vadd.f32 %v321, %v336
        %v350 = vadd.f32 %v322, %v341
        %v351 = vadd.f32 %v323, %v346
        %v352 = vmax.f32 %v348, 0.0
        %v353 = vmax.f32 %v349, 0.0
        %v354 = vmax.f32 %v350, 0.0
        %v355 = vmax.f32 %v351, 0.0
        %356 = vst [vmem:[%s184] sm:$0xff] %v352
        %357 = vst [vmem:[%s184 + $0x8] sm:$0xff] %v353
        %358 = vst [vmem:[%s184 + $0x10] sm:$0xff] %v354
        %359 = vst [vmem:[%s184 + $0x18] sm:$0xff] %v355
        %s360 = sand.u32 %s112, 1
        %s361 = sand.u32 %s112, 1
        %s362 = smul.addr %s361, 32
        %s363 = scalar_lea.vmem [#allocation2], %s362
        // Predicated region
        $region37: #{concat_deconv_bn_relu.3} parent=35 // pred_check
          %p364 = pneg %p122
        $region38: #{concat_deconv_bn_relu.3} parent=35 // pred_check_branch
          %366 = sbr.rel (%p364) target = $region40
        $region39: #{concat_deconv_bn_relu.3} parent=35 // pred_region
          %s367 = smul.addr %s15, 8
          %s368 = scalar_lea.vmem %s4, %s367
          // Predicated region
          $region41: #{concat_deconv_bn_relu.3} parent=39 // pred_check
            _
          $region42: #{concat_deconv_bn_relu.3} parent=39 // pred_check_branch
            %370 = sbr.rel (0) target = $region44
          $region43: #{concat_deconv_bn_relu.3} parent=39 // pred_region
            // Predicated region
            $region45: #{concat_deconv_bn_relu.3} parent=43 // pred_check
              _
            $region46: #{concat_deconv_bn_relu.3} parent=43 // pred_check_branch
              %372 = sbr.rel (0) target = $region48
            $region47: #{concat_deconv_bn_relu.3} parent=43 // pred_region
              // Predicated region
              $region60: #{concat_deconv_bn_relu.3} parent=47 // pred_check
                _
              $region61: #{concat_deconv_bn_relu.3} parent=47 // pred_check_branch
                %393 = sbr.rel (0) target = $region63
              $region62: #{concat_deconv_bn_relu.3} parent=47 // pred_region
                loop: start=0, step=1, limit=1
                $region64: #{concat_deconv_bn_relu.3} parent=62 // loop_pre_header
                  _
                $region65: #{concat_deconv_bn_relu.3} parent=62 // loop_header
                  %s395 = sphi 0, %s399
                  %p396 = scmp.ge.s32.totalorder %s395, 1
                  %s400 = sphi %s363, %s363
                  %s401 = sphi %s368, %s368
                $region66: #{concat_deconv_bn_relu.3} parent=62 // loop_header_branch
                  %398 = sbr.rel (%p396) target = $region70
                $region67: #{concat_deconv_bn_relu.3} parent=62 // loop_body
                  %v402 = vld [vmem:[%s400] sm:$0xff]
                  %403 = vst [vmem:[%s401] sm:$0xff] %v402
                  %v404 = vld [vmem:[%s400 + $0x8] sm:$0xff]
                  %405 = vst [vmem:[%s401 + $0x20] sm:$0xff] %v404
                  %v406 = vld [vmem:[%s400 + $0x10] sm:$0xff]
                  %407 = vst [vmem:[%s401 + $0x40] sm:$0xff] %v406
                  %v408 = vld [vmem:[%s400 + $0x18] sm:$0xff]
                  %409 = vst [vmem:[%s401 + $0x60] sm:$0xff] %v408
                $region68: #{concat_deconv_bn_relu.3} parent=62 // loop_footer
                  %s399 = sadd.s32 1, %s395
                $region69: #{concat_deconv_bn_relu.3} parent=62 // loop_footer_branch
                  %394 = sbr.rel target = $region65
                $region70: #{concat_deconv_bn_relu.3} parent=62 // loop_exit
                  _
              $region63: #{concat_deconv_bn_relu.3} parent=47 // pred_fallthru
                _
              // Predicated region
              $region71: #{concat_deconv_bn_relu.3} parent=47 // pred_check
                _
              $region72: #{concat_deconv_bn_relu.3} parent=47 // pred_check_branch
                %411 = sbr.rel target = $region74
              $region73: #{concat_deconv_bn_relu.3} parent=47 // pred_region
                _
              $region74: #{concat_deconv_bn_relu.3} parent=47 // pred_fallthru
                _
            $region48: #{concat_deconv_bn_relu.3} parent=43 // pred_fallthru
              _
            // Predicated region
            $region49: #{concat_deconv_bn_relu.3} parent=43 // pred_check
              _
            $region50: #{concat_deconv_bn_relu.3} parent=43 // pred_check_branch
              %374 = sbr.rel target = $region52
            $region51: #{concat_deconv_bn_relu.3} parent=43 // pred_region
              loop: start=0, step=1, limit=1
              $region53: #{concat_deconv_bn_relu.3} parent=51 // loop_pre_header
                _
              $region54: #{concat_deconv_bn_relu.3} parent=51 // loop_header
                %s377 = sphi 0, %s381
                %p378 = scmp.ge.s32.totalorder %s377, 1
                %s382 = sphi %s363, %s363
                %s383 = sphi %s368, %s368
              $region55: #{concat_deconv_bn_relu.3} parent=51 // loop_header_branch
                %380 = sbr.rel (%p378) target = $region59
              $region56: #{concat_deconv_bn_relu.3} parent=51 // loop_body
                %v384 = vld [vmem:[%s382] sm:$0xff]
                %385 = vst [vmem:[%s383] sm:$0xff] %v384
                %v386 = vld [vmem:[%s382 + $0x8] sm:$0xff]
                %387 = vst [vmem:[%s383 + $0x20] sm:$0xff] %v386
                %v388 = vld [vmem:[%s382 + $0x10] sm:$0xff]
                %389 = vst [vmem:[%s383 + $0x40] sm:$0xff] %v388
                %v390 = vld [vmem:[%s382 + $0x18] sm:$0xff]
                %391 = vst [vmem:[%s383 + $0x60] sm:$0xff] %v390
              $region57: #{concat_deconv_bn_relu.3} parent=51 // loop_footer
                %s381 = sadd.s32 1, %s377
              $region58: #{concat_deconv_bn_relu.3} parent=51 // loop_footer_branch
                %376 = sbr.rel target = $region54
              $region59: #{concat_deconv_bn_relu.3} parent=51 // loop_exit
                _
            $region52: #{concat_deconv_bn_relu.3} parent=43 // pred_fallthru
              _
          $region44: #{concat_deconv_bn_relu.3} parent=39 // pred_fallthru
            _
          %412 = vnop
        $region40: #{concat_deconv_bn_relu.3} parent=35 // pred_fallthru
          _
      $region36: #{concat_deconv_bn_relu.3} parent=5 // pred_fallthru
        _
      %p413 = scmp.le.s32.totalorder 2, %s10
      // Predicated region
      $region75: #{concat_deconv_bn_relu.3} parent=5 // pred_check
        %p414 = pneg %p413
      $region76: #{concat_deconv_bn_relu.3} parent=5 // pred_check_branch
        %416 = sbr.rel (%p414) target = $region78
      $region77: #{concat_deconv_bn_relu.3} parent=5 // pred_region
        %s417 = ssub.s32 %s10, 2
        // Predicated region
        $region79: #{concat_deconv_bn_relu.3} parent=77 // pred_check
          %p418 = pneg %p128
        $region80: #{concat_deconv_bn_relu.3} parent=77 // pred_check_branch
          %420 = sbr.rel (%p418) target = $region82
        $region81: #{concat_deconv_bn_relu.3} parent=77 // pred_region
          %s421 = sand.u32 %s113, 1
          %s422 = sand.u32 %s113, 1
          %s423 = smul.addr %s422, 32
          %s424 = scalar_lea.vmem [#allocation2], %s423
        $region82: #{concat_deconv_bn_relu.3} parent=77 // pred_fallthru
          _
      $region78: #{concat_deconv_bn_relu.3} parent=5 // pred_fallthru
        _
    $region6: #{concat_deconv_bn_relu.3} parent=1 // loop_footer
      %s14 = sadd.s32 1, %s10
    $region7: #{concat_deconv_bn_relu.3} parent=1 // loop_footer_branch
      %9 = sbr.rel target = $region3
    $region8: #{concat_deconv_bn_relu.3} parent=1 // loop_exit
      _

// kernel: concat_deconv_bn_relu.2
$region0: #{concat_deconv_bn_relu.2}
  #allocation0 [shape = 'u32[]', space=smem, size = 0x4, offset = 0x4, fixed_abs, tag = 'smem constant byte address 0x4 - core index']
  #allocation1 [shape = 'u32[144,128]{1,0:T(1,128)}', space=vmem, size = 0x12000, scoped, tag = 'internal scratch']
  %s0 = inlined_call_operand.vmem [shape: f32[4,512], index: 0, kind: input, shape index: {}]
  %s1 = inlined_call_operand.vmem [shape: f32[4,4,4], index: 1, kind: output, shape index: {0}]
  %s2 = inlined_call_operand.vmem [shape: f32[4,4,1], index: 2, kind: output, shape index: {1}]
  %3 = xla_tuple %s1, %s2
  %s4 = sld [smem:[#allocation0]]
  $region45: #{concat_deconv_bn_relu.2} parent=0
    _
  %s6 = ssub.s32 1, %s4
  %s7 = scalar_select 0, %s6, %s4
  loop: start=0, step=1, limit=6
  $region2: #{concat_deconv_bn_relu.2} parent=0 // loop_pre_header
    _
  $region3: #{concat_deconv_bn_relu.2} parent=0 // loop_header
    %s9 = sphi 0, %s13
    %p10 = scmp.ge.s32.totalorder %s9, 6
    %s19 = sphi 0, %s21
    %s22 = sphi 0, %s19
    %s23 = sphi 0, %s22
    %s39 = sphi 0, %s23
    %s45 = sphi 0, %s47
    %s48 = sphi 0, %s45
    %s49 = sphi 0, %s48
    %s65 = sphi 0, %s49
    %s71 = sphi 0, %s73
    %s74 = sphi 0, %s71
    %s75 = sphi 0, %s74
    %s91 = sphi 0, %s75
  $region4: #{concat_deconv_bn_relu.2} parent=0 // loop_header_branch
    %12 = sbr.rel (%p10) target = $region8
  $region5: #{concat_deconv_bn_relu.2} parent=0 // loop_body
    %s14 = ssub.s32 %s9, 1
    %s15 = ssub.s32 %s9, 2
    %s16 = sadd.s32 %s9, 1
    %s17 = ssub.s32 %s9, %s16
    %p18 = scmp.eq.s32.totalorder %s17, 0
    %s20 = sadd.s32 %s19, 1
    %s21 = scalar_select %p18, %s19, %s20
    %p24 = pneg %p18
    %p25 = scmp.eq.s32.totalorder %s9, 3
    %p26 = por %p24, %p25
    %p27 = scmp.ne.s32.totalorder %s19, %s22
    %p28 = scmp.eq.s32.totalorder %s9, 0
    %p29 = por %p27, %p28
    %p30 = scmp.ne.s32.totalorder %s19, %s22
    %p31 = scmp.eq.s32.totalorder %s14, 3
    %p32 = por %p30, %p31
    %p33 = scmp.ne.s32.totalorder %s22, %s23
    %p34 = scmp.eq.s32.totalorder %s14, 0
    %p35 = por %p33, %p34
    %p36 = scmp.ne.s32.totalorder %s22, %s23
    %p37 = scmp.eq.s32.totalorder %s15, 3
    %p38 = por %p36, %p37
    %p40 = scmp.ne.s32.totalorder %s23, %s39
    %p41 = scmp.eq.s32.totalorder %s15, 0
    %p42 = por %p40, %p41
    %s43 = ssub.s32 %s9, %s16
    %p44 = scmp.eq.s32.totalorder %s43, 0
    %s46 = sadd.s32 %s45, 1
    %s47 = scalar_select %p44, %s45, %s46
    %p50 = pneg %p44
    %p51 = scmp.eq.s32.totalorder %s9, 3
    %p52 = por %p50, %p51
    %p53 = scmp.ne.s32.totalorder %s45, %s48
    %p54 = scmp.eq.s32.totalorder %s9, 0
    %p55 = por %p53, %p54
    %p56 = scmp.ne.s32.totalorder %s45, %s48
    %p57 = scmp.eq.s32.totalorder %s14, 3
    %p58 = por %p56, %p57
    %p59 = scmp.ne.s32.totalorder %s48, %s49
    %p60 = scmp.eq.s32.totalorder %s14, 0
    %p61 = por %p59, %p60
    %p62 = scmp.ne.s32.totalorder %s48, %s49
    %p63 = scmp.eq.s32.totalorder %s15, 3
    %p64 = por %p62, %p63
    %p66 = scmp.ne.s32.totalorder %s49, %s65
    %p67 = scmp.eq.s32.totalorder %s15, 0
    %p68 = por %p66, %p67
    %s69 = ssub.s32 %s9, %s16
    %p70 = scmp.eq.s32.totalorder %s69, 0
    %s72 = sadd.s32 %s71, 1
    %s73 = scalar_select %p70, %s71, %s72
    %p76 = pneg %p70
    %p77 = scmp.eq.s32.totalorder %s9, 3
    %p78 = por %p76, %p77
    %p79 = scmp.ne.s32.totalorder %s71, %s74
    %p80 = scmp.eq.s32.totalorder %s9, 0
    %p81 = por %p79, %p80
    %p82 = scmp.ne.s32.totalorder %s71, %s74
    %p83 = scmp.eq.s32.totalorder %s14, 3
    %p84 = por %p82, %p83
    %p85 = scmp.ne.s32.totalorder %s74, %s75
    %p86 = scmp.eq.s32.totalorder %s14, 0
    %p87 = por %p85, %p86
    %p88 = scmp.ne.s32.totalorder %s74, %s75
    %p89 = scmp.eq.s32.totalorder %s15, 3
    %p90 = por %p88, %p89
    %p92 = scmp.ne.s32.totalorder %s75, %s91
    %p93 = scmp.eq.s32.totalorder %s15, 0
    %p94 = por %p92, %p93
    %p95 = scmp.le.s32.totalorder 1, %s9
    %p96 = scmp.lt.s32.totalorder %s9, 5
    %p97 = pnand %p95, %p96
    %p98 = pneg %p97
    // Predicated region
    $region9: #{concat_deconv_bn_relu.2} parent=5 // pred_check
      _
    $region10: #{concat_deconv_bn_relu.2} parent=5 // pred_check_branch
      %100 = sbr.rel (%p97) target = $region12
    $region11: #{concat_deconv_bn_relu.2} parent=5 // pred_region
      %s101 = ssub.s32 %s9, 1
    $region12: #{concat_deconv_bn_relu.2} parent=5 // pred_fallthru
      _
    %p102 = scmp.lt.s32.totalorder %s9, 4
    // Predicated region
    $region13: #{concat_deconv_bn_relu.2} parent=5 // pred_check
      %p103 = pneg %p102
    $region14: #{concat_deconv_bn_relu.2} parent=5 // pred_check_branch
      %105 = sbr.rel (%p103) target = $region16
    $region15: #{concat_deconv_bn_relu.2} parent=5 // pred_region
      // Predicated region
      $region17: #{concat_deconv_bn_relu.2} parent=15 // pred_check
        %p106 = pneg %p29
      $region18: #{concat_deconv_bn_relu.2} parent=15 // pred_check_branch
        %108 = sbr.rel (%p106) target = $region20
      $region19: #{concat_deconv_bn_relu.2} parent=15 // pred_region
        %p109 = scmp.lt.s32.totalorder %s9, 3
        %s110 = scalar_select %p109, %s9, 3
        %s111 = smul.addr %s110, 4
        %s112 = scalar_lea.vmem %s0, %s111
      $region20: #{concat_deconv_bn_relu.2} parent=15 // pred_fallthru
        _
    $region16: #{concat_deconv_bn_relu.2} parent=5 // pred_fallthru
      _
    %p113 = scmp.le.s32.totalorder 1, %s9
    %p114 = scmp.lt.s32.totalorder %s9, 5
    %p115 = pnand %p113, %p114
    %p116 = pneg %p115
    // Predicated region
    $region21: #{concat_deconv_bn_relu.2} parent=5 // pred_check
      _
    $region22: #{concat_deconv_bn_relu.2} parent=5 // pred_check_branch
      %118 = sbr.rel (%p115) target = $region24
    $region23: #{concat_deconv_bn_relu.2} parent=5 // pred_region
      %s119 = ssub.s32 %s9, 1
      %p120 = scmp.lt.s32.totalorder %s14, 3
      %s121 = scalar_select %p120, %s14, 3
      %s122 = smul.addr %s121, 4
      %s123 = scalar_lea.vmem %s0, %s122
      %p124 = pneg %p35
      %p125 = pneg %p32
      %p126 = pneg %p61
      %p127 = pneg %p58
      %p128 = scmp.lt.s32.totalorder %s14, 3
      %s129 = scalar_select %p128, %s14, 3
      %s130 = smul.addr %s129, 4
      %s131 = scalar_lea.vmem %s1, %s130
      %p132 = pneg %p87
      %p133 = pneg %p84
      %p134 = scmp.lt.s32.totalorder %s14, 3
      %s135 = scalar_select %p134, %s14, 3
      %s136 = smul.addr %s135, 4
      %s137 = scalar_lea.vmem %s2, %s136
      %p138 = scmp.lt.s32.totalorder %s14, 3
      %s139 = scalar_select %p138, %s14, 3
      %s140 = smul.addr %s139, 4
      %s141 = scalar_lea.vmem %s0, %s140
      %p142 = scmp.lt.s32.totalorder %s14, 3
      %s143 = scalar_select %p142, %s14, 3
      %s144 = smul.addr %s143, 4
      %s145 = scalar_lea.vmem %s1, %s144
      %p146 = scmp.lt.s32.totalorder %s14, 3
      %s147 = scalar_select %p146, %s14, 3
      %s148 = smul.addr %s147, 4
      %s149 = scalar_lea.vmem %s2, %s148
      %v150 = vld [vmem:[%s141] sm:$0xf]
      %151 = vmatprep.subr.mxu0 0.0
      %152 = vmatpush1.xpose.msra.mxu0 %v150
      %153 = vmatprep.subr.mxu0 0.0
      %154 = vmatpush1.xpose.msra.mxu0 0.0
      %155 = vmatprep.subr.mxu0 0.0
      %156 = vmatpush1.xpose.msra.mxu0 0.0
      %157 = vmatprep.subr.mxu0 0.0
      %158 = vmatpush1.xpose.msra.mxu0 0.0
      %159 = vmatprep.subr.mxu0 0.0
      %160 = vmatpush1.xpose.msra.mxu0 0.0
      %161 = vmatprep.subr.mxu0 0.0
      %162 = vmatpush1.xpose.msra.mxu0 0.0
      %163 = vmatprep.subr.mxu0 0.0
      %164 = vmatpush1.xpose.msra.mxu0 0.0
      %165 = vmatprep.subr.mxu0 0.0
      %166 = vmatpush1.xpose.msra.mxu0 0.0
      %167 = vmatprep.subr.mxu0 0.0
      %168 = vmatpush1.xpose.msra.mxu0 0.0
      %169 = vmatprep.subr.mxu0 0.0
      %170 = vmatpush1.xpose.msra.mxu0 0.0
      %171 = vmatprep.subr.mxu0 0.0
      %172 = vmatpush1.xpose.msra.mxu0 0.0
      %173 = vmatprep.subr.mxu0 0.0
      %174 = vmatpush1.xpose.msra.mxu0 0.0
      %175 = vmatprep.subr.mxu0 0.0
      %176 = vmatpush1.xpose.msra.mxu0 0.0
      %177 = vmatprep.subr.mxu0 0.0
      %178 = vmatpush1.xpose.msra.mxu0 0.0
      %179 = vmatprep.subr.mxu0 0.0
      %180 = vmatpush1.xpose.msra.mxu0 0.0
      %181 = vmatprep.subr.mxu0 0.0
      %182 = vmatpush1.xpose.msra.mxu0 0.0
      %183 = vmatprep.subr.mxu0 0.0
      %184 = vmatpush1.xpose.msra.mxu0 0.0
      %185 = vmatprep.subr.mxu0 0.0
      %186 = vmatpush1.xpose.msra.mxu0 0.0
      %187 = vmatprep.subr.mxu0 0.0
      %188 = vmatpush1.xpose.msra.mxu0 0.0
      %189 = vmatprep.subr.mxu0 0.0
      %190 = vmatpush1.xpose.msra.mxu0 0.0
      %191 = vmatprep.subr.mxu0 0.0
      %192 = vmatpush1.xpose.msra.mxu0 0.0
      %193 = vmatprep.subr.mxu0 0.0
      %194 = vmatpush1.xpose.msra.mxu0 0.0
      %195 = vmatprep.subr.mxu0 0.0
      %196 = vmatpush1.xpose.msra.mxu0 0.0
      %197 = vmatprep.subr.mxu0 0.0
      %198 = vmatpush1.xpose.msra.mxu0 0.0
      %199 = vmatprep.subr.mxu0 0.0
      %200 = vmatpush1.xpose.msra.mxu0 0.0
      %201 = vmatprep.subr.mxu0 0.0
      %202 = vmatpush1.xpose.msra.mxu0 0.0
      %203 = vmatprep.subr.mxu0 0.0
      %204 = vmatpush1.xpose.msra.mxu0 0.0
      %205 = vmatprep.subr.mxu0 0.0
      %206 = vmatpush1.xpose.msra.mxu0 0.0
      %207 = vmatprep.subr.mxu0 0.0
      %208 = vmatpush1.xpose.msra.mxu0 0.0
      %209 = vmatprep.subr.mxu0 0.0
      %210 = vmatpush1.xpose.msra.mxu0 0.0
      %211 = vmatprep.subr.mxu0 0.0
      %212 = vmatpush1.xpose.msra.mxu0 0.0
      %213 = vmatprep.subr.mxu0 0.0
      %214 = vmatpush1.xpose.msra.mxu0 0.0
      %215 = vmatprep.mubr.f32.mxu0 0.0
      %216 = vmatmul.mubr.f32.gmra.mrb[0].mxu0 %v150
      %v217 = vpop.f32.mrb[0].mxu0
      %v218 = vadd.f32 0.0, %v217
      %v219 = vpop.f32.mrb[0].mxu0
      %220 = vdwg.mxu0
      %vm221 = vcmask 27648
      %222 = vst.msk [vmem:[%s145] sm:$0xf] %vm221, %v218
      %vm223 = vcmask 1043456
      %v224 = vsel %vm223, %v150, 0.0
      %225 = vadd.xlane.f32.xlu0 %v224
      %v226 = vpop.xlane.xlu0 %225
      %vm227 = vcmask 3072
      %228 = vst.msk [vmem:[%s149] sm:$0xf] %vm227, %v226
      %p229 = scmp.lt.s32.totalorder %s14, 3
      %s230 = scalar_select %p229, %s14, 3
      %s231 = smul.addr %s230, 4
      %s232 = scalar_lea.vmem %s1, %s231
      %p233 = scmp.lt.s32.totalorder %s14, 3
      %s234 = scalar_select %p233, %s14, 3
      %s235 = smul.addr %s234, 4
      %s236 = scalar_lea.vmem %s2, %s235
      // Predicated region
      $region25: #{concat_deconv_bn_relu.2} parent=23 // pred_check
        %p237 = pneg %p58
      $region26: #{concat_deconv_bn_relu.2} parent=23 // pred_check_branch
        %239 = sbr.rel (%p237) target = $region28
      $region27: #{concat_deconv_bn_relu.2} parent=23 // pred_region
        _
      $region28: #{concat_deconv_bn_relu.2} parent=23 // pred_fallthru
        _
      // Predicated region
      $region29: #{concat_deconv_bn_relu.2} parent=23 // pred_check
        %p240 = pneg %p84
      $region30: #{concat_deconv_bn_relu.2} parent=23 // pred_check_branch
        %242 = sbr.rel (%p240) target = $region32
      $region31: #{concat_deconv_bn_relu.2} parent=23 // pred_region
        _
      $region32: #{concat_deconv_bn_relu.2} parent=23 // pred_fallthru
        _
    $region24: #{concat_deconv_bn_relu.2} parent=5 // pred_fallthru
      _
    %p243 = scmp.le.s32.totalorder 2, %s9
    // Predicated region
    $region33: #{concat_deconv_bn_relu.2} parent=5 // pred_check
      %p244 = pneg %p243
    $region34: #{concat_deconv_bn_relu.2} parent=5 // pred_check_branch
      %246 = sbr.rel (%p244) target = $region36
    $region35: #{concat_deconv_bn_relu.2} parent=5 // pred_region
      %s247 = ssub.s32 %s9, 2
      // Predicated region
      $region37: #{concat_deconv_bn_relu.2} parent=35 // pred_check
        %p248 = pneg %p64
      $region38: #{concat_deconv_bn_relu.2} parent=35 // pred_check_branch
        %250 = sbr.rel (%p248) target = $region40
      $region39: #{concat_deconv_bn_relu.2} parent=35 // pred_region
        %p251 = scmp.lt.s32.totalorder %s15, 3
        %s252 = scalar_select %p251, %s15, 3
        %s253 = smul.addr %s252, 4
        %s254 = scalar_lea.vmem %s1, %s253
      $region40: #{concat_deconv_bn_relu.2} parent=35 // pred_fallthru
        _
      // Predicated region
      $region41: #{concat_deconv_bn_relu.2} parent=35 // pred_check
        %p255 = pneg %p90
      $region42: #{concat_deconv_bn_relu.2} parent=35 // pred_check_branch
        %257 = sbr.rel (%p255) target = $region44
      $region43: #{concat_deconv_bn_relu.2} parent=35 // pred_region
        %p258 = scmp.lt.s32.totalorder %s15, 3
        %s259 = scalar_select %p258, %s15, 3
        %s260 = smul.addr %s259, 4
        %s261 = scalar_lea.vmem %s2, %s260
      $region44: #{concat_deconv_bn_relu.2} parent=35 // pred_fallthru
        _
    $region36: #{concat_deconv_bn_relu.2} parent=5 // pred_fallthru
      _
  $region6: #{concat_deconv_bn_relu.2} parent=0 // loop_footer
    %s13 = sadd.s32 1, %s9
  $region7: #{concat_deconv_bn_relu.2} parent=0 // loop_footer_branch
    %8 = sbr.rel target = $region3
  $region8: #{concat_deconv_bn_relu.2} parent=0 // loop_exit
    _

</llo_original>
